<compile_context>
chip_gen: v7x
topology: tpu7x:2x2x1
jax: 0.10.0
libtpu: 0.0.40
codegen_flags: <defaults>
</compile_context>

<pallas_src>
import functools

import jax
import jax.numpy as jnp
from jax.experimental import pallas as pl
from jax.experimental.pallas import tpu as pltpu

LANE = 128     # lane width: last dim of every block should be a multiple of this
SUBLANE = 8    # sublane width for f32: second-to-last dim multiple


def _round_up(n: int, m: int) -> int:
    return ((n + m - 1) // m) * m


def bpnet_kernel(x_ref, w1_ref, b1_ref, w2_ref, b2_ref, o_ref):
    # hidden = Linear(n_input, n_hidden): bf16 operands, f32 accumulation on the MXU.
    h = jnp.dot(x_ref[...], w1_ref[...], preferred_element_type=jnp.float32)
    # Bias + ReLU epilogue in f32 (v5e VPU has no bf16 path).
    h = jnp.maximum(h + b1_ref[...], 0.0)
    # out = Linear(n_hidden, n_output): cast activation back to bf16 for the MXU.
    o = jnp.dot(h.astype(w2_ref.dtype), w2_ref[...],
                preferred_element_type=jnp.float32)
    o_ref[...] = (o + b2_ref[...]).astype(o_ref.dtype)


@functools.partial(jax.jit, static_argnames=("block_batch",))
def bpnet_forward(x, w1, b1, w2, b2, *, block_batch: int = 512):
    """Fused Linear -> ReLU -> Linear forward.

    x:  [batch, n_input]            float32
    w1: [n_input, n_hidden]         (transposed vs torch nn.Linear's [out, in])
    b1: [1, n_hidden]
    w2: [n_hidden, n_output]
    b2: [1, n_output]
    returns [batch, n_output] float32
    """
    batch, n_input = x.shape
    n_hidden = w1.shape[1]
    n_output = w2.shape[1]

    # ---- Pad feature dims to the 128-lane width (lane-dense MXU operands & stores).
    ni_p = _round_up(n_input, LANE)
    nh_p = _round_up(n_hidden, LANE)
    no_p = _round_up(n_output, LANE)

    # ---- Batch tile: large for throughput, but never larger than the (sublane-
    # rounded) batch itself.  Rows are padded with zeros and sliced off at the end.
    tb = min(block_batch, _round_up(batch, SUBLANE))
    batch_p = _round_up(batch, tb)
    num_tiles = batch_p // tb

    compute_dtype = jnp.bfloat16

    # Zero-padding is exact: padded input cols hit zero W1 rows, padded hidden
    # units get zero bias -> ReLU(0)=0 -> multiply zero W2 rows; padded output
    # cols are simply discarded by the final slice.
    xp = jnp.pad(x.astype(compute_dtype),
                 ((0, batch_p - batch), (0, ni_p - n_input)))
    w1p = jnp.pad(w1.astype(compute_dtype),
                  ((0, ni_p - n_input), (0, nh_p - n_hidden)))
    b1p = jnp.pad(b1.astype(jnp.float32), ((0, 0), (0, nh_p - n_hidden)))
    w2p = jnp.pad(w2.astype(compute_dtype),
                  ((0, nh_p - n_hidden), (0, no_p - n_output)))
    b2p = jnp.pad(b2.astype(jnp.float32), ((0, 0), (0, no_p - n_output)))

    out_p = pl.pallas_call(
        bpnet_kernel,
        out_shape=jax.ShapeDtypeStruct((batch_p, no_p), jnp.float32),
        grid=(num_tiles,),
        in_specs=[
            # x tile marches with the batch grid (double-buffered by Pallas).
            pl.BlockSpec((tb, ni_p), lambda i: (i, 0)),
            # Weights & biases: constant index_map -> resident in VMEM, DMAed once.
            pl.BlockSpec((ni_p, nh_p), lambda i: (0, 0)),
            pl.BlockSpec((1, nh_p), lambda i: (0, 0)),
            pl.BlockSpec((nh_p, no_p), lambda i: (0, 0)),
            pl.BlockSpec((1, no_p), lambda i: (0, 0)),
        ],
        out_specs=pl.BlockSpec((tb, no_p), lambda i: (i, 0)),
        compiler_params=pltpu.CompilerParams(
            # Batch tiles are independent: shard across v7x's 2 TCs (no-op on v5e/v6e).
            dimension_semantics=("parallel",),
            # Sized for v7x's 64 MiB physical VMEM; working set here is < 2 MiB.
            vmem_limit_bytes=32 * 1024 * 1024,
        ),
    )(xp, w1p, b1p, w2p, b2p)

    return out_p[:batch, :n_output]


def _reference_bf16(x, w1, b1, w2, b2):
    """Reference matching the kernel's numerics (bf16 matmul operands, f32 acc)."""
    h = jnp.dot(x.astype(jnp.bfloat16), w1.astype(jnp.bfloat16),
                preferred_element_type=jnp.float32) + b1
    h = jnp.maximum(h, 0.0)
    return jnp.dot(h.astype(jnp.bfloat16), w2.astype(jnp.bfloat16),
                   preferred_element_type=jnp.float32) + b2


if __name__ == "__main__":
    # BpNet(n_input=16, n_hiden=32, n_output=8), batch=8  (forward pass only;
    # the training loop / optimizer in the original script is out of scope).
    batch, n_input, n_hidden, n_output = 8, 16, 32, 8

    key = jax.random.PRNGKey(0)
    kx, kw1, kb1, kw2, kb2 = jax.random.split(key, 5)

    x = jax.random.normal(kx, (batch, n_input), dtype=jnp.float32)

    # Init mimicking nn.Linear's uniform(-1/sqrt(fan_in), 1/sqrt(fan_in)).
    bound1 = 1.0 / (n_input ** 0.5)
    w1 = jax.random.uniform(kw1, (n_input, n_hidden), jnp.float32, -bound1, bound1)
    b1 = jax.random.uniform(kb1, (1, n_hidden), jnp.float32, -bound1, bound1)

    bound2 = 1.0 / (n_hidden ** 0.5)
    w2 = jax.random.uniform(kw2, (n_hidden, n_output), jnp.float32, -bound2, bound2)
    b2 = jax.random.uniform(kb2, (1, n_output), jnp.float32, -bound2, bound2)

    out = bpnet_forward(x, w1, b1, w2, b2)
    jax.block_until_ready(out)
    assert out.shape == (batch, n_output)

    # Tight check against a bf16-matched reference, loose check against pure f32.
    ref_bf16 = _reference_bf16(x, w1, b1, w2, b2)
    ref_f32 = jnp.maximum(x @ w1 + b1, 0.0) @ w2 + b2
    assert jnp.allclose(out, ref_bf16, atol=1e-3, rtol=1e-3), "mismatch vs bf16 ref"
    assert jnp.allclose(out, ref_f32, atol=5e-2, rtol=5e-2), "mismatch vs f32 ref"

    # Exercise the multi-tile grid path (batch not a multiple of the tile size).
    big_batch = 300
    xb = jax.random.normal(jax.random.PRNGKey(1), (big_batch, n_input), jnp.float32)
    out_big = bpnet_forward(xb, w1, b1, w2, b2, block_batch=128)
    jax.block_until_ready(out_big)
    ref_big = _reference_bf16(xb, w1, b1, w2, b2)
    assert out_big.shape == (big_batch, n_output)
    assert jnp.allclose(out_big, ref_big, atol=1e-3, rtol=1e-3), "mismatch (tiled)"

    print("KERNEL_OK")
</pallas_src>

<mosaic_0001>
module attributes {stable_mosaic.version = 11 : i64} {
  func.func @bpnet_kernel(%arg0: i32, %arg1: memref<8x128xbf16, #tpu.memory_space<vmem>>, %arg2: memref<128x128xbf16, #tpu.memory_space<vmem>>, %arg3: memref<1x128xf32, #tpu.memory_space<vmem>>, %arg4: memref<128x128xbf16, #tpu.memory_space<vmem>>, %arg5: memref<1x128xf32, #tpu.memory_space<vmem>>, %arg6: memref<8x128xf32, #tpu.memory_space<vmem>>) attributes {dimension_semantics = [#tpu.dimension_semantics<parallel>], iteration_bounds = array<i64: 1>, scalar_prefetch = 0 : i64, scratch_operands = 0 : i64, tpu.core_type = #tpu.core_type<tc>, window_params = [{transform_indices = @transform_0, window_bounds = array<i64: 8, 128>}, {pipeline_mode = #tpu.pipeline_mode<synchronous>, transform_indices = @transform_1, window_bounds = array<i64: 128, 128>}, {pipeline_mode = #tpu.pipeline_mode<synchronous>, transform_indices = @transform_2, window_bounds = array<i64: 1, 128>}, {pipeline_mode = #tpu.pipeline_mode<synchronous>, transform_indices = @transform_3, window_bounds = array<i64: 128, 128>}, {pipeline_mode = #tpu.pipeline_mode<synchronous>, transform_indices = @transform_4, window_bounds = array<i64: 1, 128>}, {transform_indices = @transform_5, window_bounds = array<i64: 8, 128>}]} {
    %c0 = arith.constant 0 : index
    %c0_0 = arith.constant 0 : index
    %0 = vector.load %arg1[%c0, %c0_0] : memref<8x128xbf16, #tpu.memory_space<vmem>>, vector<8x128xbf16>
    %c0_1 = arith.constant 0 : index
    %c0_2 = arith.constant 0 : index
    %1 = vector.load %arg2[%c0_1, %c0_2] : memref<128x128xbf16, #tpu.memory_space<vmem>>, vector<128x128xbf16>
    %cst = arith.constant dense<0.000000e+00> : vector<8x128xf32>
    %2 = tpu.matmul %0, %1, %cst {dimension_numbers = #tpu.dot_dimension_numbers<[1], [0], [0], [1], [0, 0, 1, 1], [], []>} : vector<8x128xbf16>, vector<128x128xbf16>, vector<8x128xf32> -> vector<8x128xf32>
    %c0_3 = arith.constant 0 : index
    %c0_4 = arith.constant 0 : index
    %3 = vector.load %arg3[%c0_3, %c0_4] : memref<1x128xf32, #tpu.memory_space<vmem>>, vector<1x128xf32>
    %4 = vector.broadcast %3 : vector<1x128xf32> to vector<8x128xf32>
    %5 = arith.addf %2, %4 : vector<8x128xf32>
    %cst_5 = arith.constant 0.000000e+00 : f32
    %6 = vector.broadcast %cst_5 : f32 to vector<8x128xf32>
    %7 = arith.maximumf %5, %6 : vector<8x128xf32>
    %8 = arith.truncf %7 : vector<8x128xf32> to vector<8x128xbf16>
    %c0_6 = arith.constant 0 : index
    %c0_7 = arith.constant 0 : index
    %9 = vector.load %arg4[%c0_6, %c0_7] : memref<128x128xbf16, #tpu.memory_space<vmem>>, vector<128x128xbf16>
    %cst_8 = arith.constant dense<0.000000e+00> : vector<8x128xf32>
    %10 = tpu.matmul %8, %9, %cst_8 {dimension_numbers = #tpu.dot_dimension_numbers<[1], [0], [0], [1], [0, 0, 1, 1], [], []>} : vector<8x128xbf16>, vector<128x128xbf16>, vector<8x128xf32> -> vector<8x128xf32>
    %c0_9 = arith.constant 0 : index
    %c0_10 = arith.constant 0 : index
    %11 = vector.load %arg5[%c0_9, %c0_10] : memref<1x128xf32, #tpu.memory_space<vmem>>, vector<1x128xf32>
    %12 = vector.broadcast %11 : vector<1x128xf32> to vector<8x128xf32>
    %13 = arith.addf %10, %12 : vector<8x128xf32>
    %c0_11 = arith.constant 0 : index
    %c0_12 = arith.constant 0 : index
    %14 = vector.load %arg6[%c0_11, %c0_12] : memref<8x128xf32, #tpu.memory_space<vmem>>, vector<8x128xf32>
    tpu.vector_store %arg6[%c0_11, %c0_12], %13 {strides = array<i32>} : memref<8x128xf32, #tpu.memory_space<vmem>>, vector<8x128xf32>,
    return
  }
  func.func @transform_0(%arg0: i32) -> (i32, i32) {
    %c0_i32 = arith.constant 0 : i32
    %c0_i32_0 = arith.constant 0 : i32
    return %arg0, %c0_i32 : i32, i32
  }
  func.func @transform_1(%arg0: i32) -> (i32, i32) {
    %c0_i32 = arith.constant 0 : i32
    %c0_i32_0 = arith.constant 0 : i32
    %c0_i32_1 = arith.constant 0 : i32
    return %c0_i32, %c0_i32_0 : i32, i32
  }
  func.func @transform_2(%arg0: i32) -> (i32, i32) {
    %c0_i32 = arith.constant 0 : i32
    %c0_i32_0 = arith.constant 0 : i32
    %c0_i32_1 = arith.constant 0 : i32
    return %c0_i32, %c0_i32_0 : i32, i32
  }
  func.func @transform_3(%arg0: i32) -> (i32, i32) {
    %c0_i32 = arith.constant 0 : i32
    %c0_i32_0 = arith.constant 0 : i32
    %c0_i32_1 = arith.constant 0 : i32
    return %c0_i32, %c0_i32_0 : i32, i32
  }
  func.func @transform_4(%arg0: i32) -> (i32, i32) {
    %c0_i32 = arith.constant 0 : i32
    %c0_i32_0 = arith.constant 0 : i32
    %c0_i32_1 = arith.constant 0 : i32
    return %c0_i32, %c0_i32_0 : i32, i32
  }
  func.func @transform_5(%arg0: i32) -> (i32, i32) {
    %c0_i32 = arith.constant 0 : i32
    %c0_i32_0 = arith.constant 0 : i32
    return %arg0, %c0_i32 : i32, i32
  }
}

</mosaic_0001>

<llo_original>
// kernel: bpnet_forward.1
$region0: #{bpnet_forward.1}
  #allocation0 [shape = 'u32[]', space=smem, size = 0x4, offset = 0x4, fixed_abs, tag = 'smem constant byte address 0x4 - core index']
  #allocation1 [shape = 'u32[144,128]{1,0:T(1,128)}', space=vmem, size = 0x12000, scoped, tag = 'internal scratch']
  %s0 = inlined_call_operand.vmem [shape: bf16[8,128], index: 0, kind: input, shape index: {}]
  %s1 = inlined_call_operand.vmem [shape: bf16[128,128], index: 1, kind: input, shape index: {}]
  %s2 = inlined_call_operand.vmem [shape: f32[1,128], index: 2, kind: input, shape index: {}]
  %s3 = inlined_call_operand.vmem [shape: bf16[128,128], index: 3, kind: input, shape index: {}]
  %s4 = inlined_call_operand.vmem [shape: f32[1,128], index: 4, kind: input, shape index: {}]
  %s5 = inlined_call_operand.hbm [shape: f32[8,128], index: 5, kind: output, shape index: {}]
  %s6 = sld [smem:[#allocation0]]
  $region30: #{bpnet_forward.1} parent=0
    _
  %s8 = ssub.s32 1, %s6
  %s9 = scalar_select 0, %s8, %s6
  $region1: #{bpnet_forward.1} parent=0
    #allocation2 [shape = 'u8[4096]{0}', space=vmem, size = 0x1000, scoped, tag = 'output window, operand 0, single buffered']
    #allocation3 [shape = 's32[1]{0}', space=sflag, size = 0x4, scoped, tag = 'scoped memory for bpnet_forward.1']
    %10 = vsyncpa [#allocation3], 0
    // Predicated region
    $region2: #{bpnet_forward.1} parent=1 // pred_check
      _
    $region3: #{bpnet_forward.1} parent=1 // pred_check_branch
      %12 = sbr.rel (0) target = $region5
    $region4: #{bpnet_forward.1} parent=1 // pred_region
      _
    $region5: #{bpnet_forward.1} parent=1 // pred_fallthru
      _
    // Predicated region
    $region6: #{bpnet_forward.1} parent=1 // pred_check
      _
    $region7: #{bpnet_forward.1} parent=1 // pred_check_branch
      %14 = sbr.rel (0) target = $region9
    $region8: #{bpnet_forward.1} parent=1 // pred_region
      _
    $region9: #{bpnet_forward.1} parent=1 // pred_fallthru
      _
    // Predicated region
    $region10: #{bpnet_forward.1} parent=1 // pred_check
      _
    $region11: #{bpnet_forward.1} parent=1 // pred_check_branch
      %16 = sbr.rel (0) target = $region13
    $region12: #{bpnet_forward.1} parent=1 // pred_region
      _
    $region13: #{bpnet_forward.1} parent=1 // pred_fallthru
      _
    // Predicated region
    $region14: #{bpnet_forward.1} parent=1 // pred_check
      _
    $region15: #{bpnet_forward.1} parent=1 // pred_check_branch
      %18 = sbr.rel (0) target = $region17
    $region16: #{bpnet_forward.1} parent=1 // pred_region
      _
    $region17: #{bpnet_forward.1} parent=1 // pred_fallthru
      _
    // Predicated region
    $region18: #{bpnet_forward.1} parent=1 // pred_check
      _
    $region19: #{bpnet_forward.1} parent=1 // pred_check_branch
      %20 = sbr.rel (0) target = $region21
    $region20: #{bpnet_forward.1} parent=1 // pred_region
      _
    $region21: #{bpnet_forward.1} parent=1 // pred_fallthru
      _
    %v22 = vld [vmem:[%s0] sm:$0xf]
    %v23 = vld [vmem:[%s1] sm:$0xf]
    %v24 = vld [vmem:[%s1 + $0x4] sm:$0xf]
    %v25 = vld [vmem:[%s1 + $0x8] sm:$0xf]
    %v26 = vld [vmem:[%s1 + $0xc] sm:$0xf]
    %v27 = vld [vmem:[%s1 + $0x10] sm:$0xf]
    %v28 = vld [vmem:[%s1 + $0x14] sm:$0xf]
    %v29 = vld [vmem:[%s1 + $0x18] sm:$0xf]
    %v30 = vld [vmem:[%s1 + $0x1c] sm:$0xf]
    %v31 = vld [vmem:[%s1 + $0x20] sm:$0xf]
    %v32 = vld [vmem:[%s1 + $0x24] sm:$0xf]
    %v33 = vld [vmem:[%s1 + $0x28] sm:$0xf]
    %v34 = vld [vmem:[%s1 + $0x2c] sm:$0xf]
    %v35 = vld [vmem:[%s1 + $0x30] sm:$0xf]
    %v36 = vld [vmem:[%s1 + $0x34] sm:$0xf]
    %v37 = vld [vmem:[%s1 + $0x38] sm:$0xf]
    %v38 = vld [vmem:[%s1 + $0x3c] sm:$0xf]
    %v39 = vld [vmem:[%s2] sm:$0x1]
    %v41 = vlaneseq
    %v42 = vshrl.u32 %v41, 7
    %v43 = vsub.s32 0, %v42
    %v44 = vrot.slane %v39, %v43
    %v62 = vunpack.c.l.b16 %v23
    %v63 = vunpack.c.l.b16 %v24
    %v64 = vunpack.c.l.b16 %v25
    %v65 = vunpack.c.l.b16 %v26
    %v66 = vunpack.c.l.b16 %v27
    %v67 = vunpack.c.l.b16 %v28
    %v68 = vunpack.c.l.b16 %v29
    %v69 = vunpack.c.l.b16 %v30
    %v70 = vunpack.c.l.b16 %v31
    %v71 = vunpack.c.l.b16 %v32
    %v72 = vunpack.c.l.b16 %v33
    %v73 = vunpack.c.l.b16 %v34
    %v74 = vunpack.c.l.b16 %v35
    %v75 = vunpack.c.l.b16 %v36
    %v76 = vunpack.c.l.b16 %v37
    %v77 = vunpack.c.l.b16 %v38
    %v78 = vpack.c.b16 %v63, %v62
    %v79 = vpack.c.b16 %v65, %v64
    %v80 = vpack.c.b16 %v67, %v66
    %v81 = vpack.c.b16 %v69, %v68
    %v82 = vpack.c.b16 %v71, %v70
    %v83 = vpack.c.b16 %v73, %v72
    %v84 = vpack.c.b16 %v75, %v74
    %v85 = vpack.c.b16 %v77, %v76
    %94 = vmatprep.subr.bf16.mxu0 0
    %95 = vmatpush1.bf16.msra.mxu0 %v78
    %96 = vmatprep.subr.bf16.mxu0 0
    %97 = vmatpush1.bf16.msra.mxu0 %v79
    %98 = vmatprep.subr.bf16.mxu0 0
    %99 = vmatpush1.bf16.msra.mxu0 %v80
    %100 = vmatprep.subr.bf16.mxu0 0
    %101 = vmatpush1.bf16.msra.mxu0 %v81
    %102 = vmatprep.subr.bf16.mxu0 0
    %103 = vmatpush1.bf16.msra.mxu0 %v82
    %104 = vmatprep.subr.bf16.mxu0 0
    %105 = vmatpush1.bf16.msra.mxu0 %v83
    %106 = vmatprep.subr.bf16.mxu0 0
    %107 = vmatpush1.bf16.msra.mxu0 %v84
    %108 = vmatprep.subr.bf16.mxu0 0
    %109 = vmatpush1.bf16.msra.mxu0 %v85
    %110 = vmatprep.subr.bf16.mxu0 0
    %111 = vmatpush1.bf16.msra.mxu0 0
    %112 = vmatprep.subr.bf16.mxu0 0
    %113 = vmatpush1.bf16.msra.mxu0 0
    %114 = vmatprep.subr.bf16.mxu0 0
    %115 = vmatpush1.bf16.msra.mxu0 0
    %116 = vmatprep.subr.bf16.mxu0 0
    %117 = vmatpush1.bf16.msra.mxu0 0
    %118 = vmatprep.subr.bf16.mxu0 0
    %119 = vmatpush1.bf16.msra.mxu0 0
    %120 = vmatprep.subr.bf16.mxu0 0
    %121 = vmatpush1.bf16.msra.mxu0 0
    %122 = vmatprep.subr.bf16.mxu0 0
    %123 = vmatpush1.bf16.msra.mxu0 0
    %124 = vmatprep.subr.bf16.mxu0 0
    %125 = vmatpush1.bf16.msra.mxu0 0
    %126 = vmatprep.mubr.bf16.mxu0 0
    %127 = vmatmul.mubr.bf16.gmra.mrb[0].mxu0 %v22
    %v128 = vpop.f32.mrb[0].mxu0
    %v129 = vadd.f32 %v44, %v128
    %v130 = vpop.f32.mrb[0].mxu0
    %v131 = vpop.f32.mrb[0].mxu0
    %v132 = vpop.f32.mrb[0].mxu0
    %133 = vdwg.mxu0
    %v134 = vmax.f32 %v129, 0.0
    %v135 = vpack.c.bf16 %v134, %v134
    %v136 = vld [vmem:[%s3] sm:$0xf]
    %v137 = vld [vmem:[%s3 + $0x4] sm:$0xf]
    %v138 = vld [vmem:[%s3 + $0x8] sm:$0xf]
    %v139 = vld [vmem:[%s3 + $0xc] sm:$0xf]
    %v140 = vld [vmem:[%s3 + $0x10] sm:$0xf]
    %v141 = vld [vmem:[%s3 + $0x14] sm:$0xf]
    %v142 = vld [vmem:[%s3 + $0x18] sm:$0xf]
    %v143 = vld [vmem:[%s3 + $0x1c] sm:$0xf]
    %v144 = vld [vmem:[%s3 + $0x20] sm:$0xf]
    %v145 = vld [vmem:[%s3 + $0x24] sm:$0xf]
    %v146 = vld [vmem:[%s3 + $0x28] sm:$0xf]
    %v147 = vld [vmem:[%s3 + $0x2c] sm:$0xf]
    %v148 = vld [vmem:[%s3 + $0x30] sm:$0xf]
    %v149 = vld [vmem:[%s3 + $0x34] sm:$0xf]
    %v150 = vld [vmem:[%s3 + $0x38] sm:$0xf]
    %v151 = vld [vmem:[%s3 + $0x3c] sm:$0xf]
    %v152 = vld [vmem:[%s4] sm:$0x1]
    %v154 = vlaneseq
    %v155 = vshrl.u32 %v154, 7
    %v156 = vsub.s32 0, %v155
    %v157 = vrot.slane %v152, %v156
    %v175 = vunpack.c.l.b16 %v136
    %v176 = vunpack.c.l.b16 %v137
    %v177 = vunpack.c.l.b16 %v138
    %v178 = vunpack.c.l.b16 %v139
    %v179 = vunpack.c.l.b16 %v140
    %v180 = vunpack.c.l.b16 %v141
    %v181 = vunpack.c.l.b16 %v142
    %v182 = vunpack.c.l.b16 %v143
    %v183 = vunpack.c.l.b16 %v144
    %v184 = vunpack.c.l.b16 %v145
    %v185 = vunpack.c.l.b16 %v146
    %v186 = vunpack.c.l.b16 %v147
    %v187 = vunpack.c.l.b16 %v148
    %v188 = vunpack.c.l.b16 %v149
    %v189 = vunpack.c.l.b16 %v150
    %v190 = vunpack.c.l.b16 %v151
    %v191 = vpack.c.b16 %v176, %v175
    %v192 = vpack.c.b16 %v178, %v177
    %v193 = vpack.c.b16 %v180, %v179
    %v194 = vpack.c.b16 %v182, %v181
    %v195 = vpack.c.b16 %v184, %v183
    %v196 = vpack.c.b16 %v186, %v185
    %v197 = vpack.c.b16 %v188, %v187
    %v198 = vpack.c.b16 %v190, %v189
    %207 = vmatprep.subr.bf16.mxu0 0
    %208 = vmatpush1.bf16.msra.mxu0 %v191
    %209 = vmatprep.subr.bf16.mxu0 0
    %210 = vmatpush1.bf16.msra.mxu0 %v192
    %211 = vmatprep.subr.bf16.mxu0 0
    %212 = vmatpush1.bf16.msra.mxu0 %v193
    %213 = vmatprep.subr.bf16.mxu0 0
    %214 = vmatpush1.bf16.msra.mxu0 %v194
    %215 = vmatprep.subr.bf16.mxu0 0
    %216 = vmatpush1.bf16.msra.mxu0 %v195
    %217 = vmatprep.subr.bf16.mxu0 0
    %218 = vmatpush1.bf16.msra.mxu0 %v196
    %219 = vmatprep.subr.bf16.mxu0 0
    %220 = vmatpush1.bf16.msra.mxu0 %v197
    %221 = vmatprep.subr.bf16.mxu0 0
    %222 = vmatpush1.bf16.msra.mxu0 %v198
    %223 = vmatprep.subr.bf16.mxu0 0
    %224 = vmatpush1.bf16.msra.mxu0 0
    %225 = vmatprep.subr.bf16.mxu0 0
    %226 = vmatpush1.bf16.msra.mxu0 0
    %227 = vmatprep.subr.bf16.mxu0 0
    %228 = vmatpush1.bf16.msra.mxu0 0
    %229 = vmatprep.subr.bf16.mxu0 0
    %230 = vmatpush1.bf16.msra.mxu0 0
    %231 = vmatprep.subr.bf16.mxu0 0
    %232 = vmatpush1.bf16.msra.mxu0 0
    %233 = vmatprep.subr.bf16.mxu0 0
    %234 = vmatpush1.bf16.msra.mxu0 0
    %235 = vmatprep.subr.bf16.mxu0 0
    %236 = vmatpush1.bf16.msra.mxu0 0
    %237 = vmatprep.subr.bf16.mxu0 0
    %238 = vmatpush1.bf16.msra.mxu0 0
    %239 = vmatprep.mubr.bf16.mxu0 0
    %240 = vmatmul.mubr.bf16.gmra.mrb[0].mxu0 %v135
    %v241 = vpop.f32.mrb[0].mxu0
    %v242 = vadd.f32 %v157, %v241
    %v243 = vpop.f32.mrb[0].mxu0
    %v244 = vpop.f32.mrb[0].mxu0
    %v245 = vpop.f32.mrb[0].mxu0
    %246 = vdwg.mxu0
    %247 = vst [vmem:[#allocation2] sm:$0xff] %v242
    // Predicated region
    $region22: #{bpnet_forward.1} parent=1 // pred_check
      _
    $region23: #{bpnet_forward.1} parent=1 // pred_check_branch
      %249 = sbr.rel (0) target = $region25
    $region24: #{bpnet_forward.1} parent=1 // pred_region
      %s251 = ssub.s32 128, 128
      %252 = vsyncadd [#allocation3], %s251
      %s254 = sshll.u32 [#allocation2], 4
      %s255 = int_to_ptr.vmem [resolvable:$true] %s254
      %257 = dma.vmem_to_hbm [thread:$0]  %s255, 128, %s5, [#allocation3]
    $region25: #{bpnet_forward.1} parent=1 // pred_fallthru
      _
    // Predicated region
    $region26: #{bpnet_forward.1} parent=1 // pred_check
      _
    $region27: #{bpnet_forward.1} parent=1 // pred_check_branch
      %259 = sbr.rel (0) target = $region29
    $region28: #{bpnet_forward.1} parent=1 // pred_region
      %260 = dma.done [#allocation3], 128
    $region29: #{bpnet_forward.1} parent=1 // pred_fallthru
      _
    %261 = vsyncpa [#allocation3], 1

</llo_original>
